<compile_context>
chip_gen: v5e
topology: v5e:2x2
jax: 0.10.0
libtpu: 0.0.40
codegen_flags: <defaults>
</compile_context>

<pallas_src>
import functools

import jax
import jax.numpy as jnp
from jax import lax
from jax.experimental import pallas as pl
from jax.experimental.pallas import tpu as pltpu


def _softplus(x):
    # Matches torch.nn.Softplus(beta=1, threshold=20): x if x > 20 else log1p(exp(x)).
    return jnp.where(x > 20.0, x, jnp.log1p(jnp.exp(jnp.minimum(x, 20.0))))


def _sanitize(x):
    # torch.nan_to_num(state, nan=0.0, posinf=1.0, neginf=-1.0)
    x = jnp.where(jnp.isnan(x), 0.0, x)
    x = jnp.where(x == jnp.inf, 1.0, x)
    x = jnp.where(x == -jnp.inf, -1.0, x)
    return x


def dkn_kernel(x_ref, w1_ref, b1_ref, wt2_ref, bt2_ref, w3_ref, b3_ref, out_ref,
               *, d, h):
    """Fused DeepKalmanNetwork forward.

    w1  : (D, F1)  column-packed first layers of all 4 heads, F1 = H+H/2+H/2+H/4
    wt2 : (H, H)   transition hidden layer
    w3  : (F1, 2D+2) block-diagonal packed final layers of all 4 heads
    out : (B, 2D+2) = [ next_state | observation | process_noise | obs_noise ]
    """
    x = _sanitize(x_ref[...].astype(jnp.float32))

    def matmul(a, w_ref):
        w = w_ref[...]
        return jnp.dot(a.astype(w.dtype), w, preferred_element_type=jnp.float32)

    relu = lambda v: jnp.maximum(v, 0.0)

    # One MXU push for all four first layers.
    h1 = relu(matmul(x, w1_ref) + b1_ref[...])            # (B, F1)

    h_t = h1[:, :h]                                       # transition hidden (B, H)
    h_rest = h1[:, h:]                                    # other heads' hiddens

    # transition_net second hidden layer.
    # TODO(synk): Dropout(0.1) omitted (identity) -- eval-mode / deterministic forward.
    h2_t = relu(matmul(h_t, wt2_ref) + bt2_ref[...])      # (B, H)

    # One block-diagonal MXU push for all four output layers.
    z = jnp.concatenate([h2_t, h_rest], axis=1)           # (B, F1)
    y = matmul(z, w3_ref) + b3_ref[...]                   # (B, 2D+2)

    # Columns 0..D     -> next_state, observation (identity)
    # Columns D+1..2D+1 -> process_noise / obs_noise (Softplus + 1e-4)
    col = lax.broadcasted_iota(jnp.int32, y.shape, 1)
    out = jnp.where(col >= d + 1, _softplus(y) + 1e-4, y)
    out_ref[...] = out.astype(out_ref.dtype)


def pack_params(p, d, h, dtype=jnp.float32):
    """Pack the 9 Linear layers into 3 fused weights (+ fused biases)."""
    h2, h4 = h // 2, h // 4
    f1 = h + h2 + h2 + h4            # fused hidden width
    fo = 2 * d + 2                   # fused output width

    w1 = jnp.concatenate([p["wt1"], p["wo1"], p["wp1"], p["wn1"]], axis=1)
    b1 = jnp.concatenate([p["bt1"], p["bo1"], p["bp1"], p["bn1"]], axis=1)

    w3 = jnp.zeros((f1, fo), jnp.float32)
    w3 = w3.at[0:h, 0:d].set(p["wt3"])                              # next_state
    w3 = w3.at[h:h + h2, d:d + 1].set(p["wo2"])                     # observation
    w3 = w3.at[h + h2:h + 2 * h2, d + 1:2 * d + 1].set(p["wp2"])    # process noise
    w3 = w3.at[h + 2 * h2:f1, 2 * d + 1:fo].set(p["wn2"])           # obs noise
    b3 = jnp.concatenate([p["bt3"], p["bo2"], p["bp2"], p["bn2"]], axis=1)

    cast = lambda a: a.astype(dtype)
    return (cast(w1), b1.astype(jnp.float32),
            cast(p["wt2"]), p["bt2"].astype(jnp.float32),
            cast(w3), b3.astype(jnp.float32))


def deep_kalman_forward(state, params, *, block_b=None, weight_dtype=jnp.float32):
    """state: (B, D) f32.  params: dict of (in,out) weights and (1,out) biases."""
    B, D = state.shape
    H = params["wt1"].shape[1]
    F1 = H + H // 2 + H // 2 + H // 4
    F_out = 2 * D + 2

    # Largest batch tile that still leaves >=2 parallel grid steps (so both
    # v7x TensorCores get work); a single full-batch block otherwise.
    if block_b is None:
        block_b = B // 2 if (B >= 16 and B % 2 == 0 and (B // 2) % 8 == 0) else B
    assert B % block_b == 0
    grid = (B // block_b,)

    packed = pack_params(params, D, H, dtype=weight_dtype)

    def const_spec(arr):
        return pl.BlockSpec(arr.shape, lambda i: (0, 0))

    in_specs = [pl.BlockSpec((block_b, D), lambda i: (i, 0))]
    in_specs += [const_spec(a) for a in packed]
    out_specs = pl.BlockSpec((block_b, F_out), lambda i: (i, 0))

    # Advisory cost hint so XLA can overlap this small call with its neighbours.
    flops = 2 * B * (D * F1 + H * H + F1 * F_out)
    transcendentals = 2 * B * F_out
    param_bytes = sum(int(a.size) * a.dtype.itemsize for a in packed)
    bytes_accessed = int(state.size) * 4 + B * F_out * 4 + param_bytes
    cost = pl.CostEstimate(flops=flops, transcendentals=transcendentals,
                           bytes_accessed=bytes_accessed)

    out = pl.pallas_call(
        functools.partial(dkn_kernel, d=D, h=H),
        out_shape=jax.ShapeDtypeStruct((B, F_out), jnp.float32),
        grid=grid,
        in_specs=in_specs,
        out_specs=out_specs,
        compiler_params=pltpu.CompilerParams(dimension_semantics=("parallel",)),
        cost_estimate=cost,
    )(state, *packed)

    next_state = out[:, :D]
    observation = out[:, D:D + 1]
    process_noise = out[:, D + 1:2 * D + 1]
    obs_noise = out[:, 2 * D + 1:]
    return next_state, observation, process_noise, obs_noise


def init_params(key, input_dim, hidden_dim):
    """Deterministic xavier_uniform weights (stored as (in,out)), zero biases."""
    def xavier(k, fan_in, fan_out):
        a = (6.0 / (fan_in + fan_out)) ** 0.5
        return jax.random.uniform(k, (fan_in, fan_out), jnp.float32, -a, a)

    D, H = input_dim, hidden_dim
    names_shapes = [
        ("wt1", (D, H)), ("wt2", (H, H)), ("wt3", (H, D)),
        ("wo1", (D, H // 2)), ("wo2", (H // 2, 1)),
        ("wp1", (D, H // 2)), ("wp2", (H // 2, D)),
        ("wn1", (D, H // 4)), ("wn2", (H // 4, 1)),
    ]
    keys = jax.random.split(key, len(names_shapes))
    params = {}
    for (name, (fi, fo)), k in zip(names_shapes, keys):
        params[name] = xavier(k, fi, fo)
        params["b" + name[1:]] = jnp.zeros((1, fo), jnp.float32)
    return params


def reference_forward(state, p):
    x = _sanitize(state)
    relu = lambda v: jnp.maximum(v, 0.0)
    h = relu(x @ p["wt1"] + p["bt1"])
    h = relu(h @ p["wt2"] + p["bt2"])
    next_state = h @ p["wt3"] + p["bt3"]
    ho = relu(x @ p["wo1"] + p["bo1"])
    observation = ho @ p["wo2"] + p["bo2"]
    hp = relu(x @ p["wp1"] + p["bp1"])
    process_noise = _softplus(hp @ p["wp2"] + p["bp2"]) + 1e-4
    hn = relu(x @ p["wn1"] + p["bn1"])
    obs_noise = _softplus(hn @ p["wn2"] + p["bn2"]) + 1e-4
    return next_state, observation, process_noise, obs_noise


if __name__ == "__main__":
    INPUT_DIM = 8
    HIDDEN_DIM = 32
    BATCH = 16

    key = jax.random.PRNGKey(0)
    k_params, k_state = jax.random.split(key)

    params = init_params(k_params, INPUT_DIM, HIDDEN_DIM)
    state = jax.random.normal(k_state, (BATCH, INPUT_DIM), jnp.float32)

    fwd = jax.jit(deep_kalman_forward)
    outs = jax.block_until_ready(fwd(state, params))

    refs = reference_forward(state, params)
    for o, r in zip(outs, refs):
        assert o.shape == r.shape and o.dtype == r.dtype
        assert jnp.allclose(o, r, rtol=1e-5, atol=1e-5), "mismatch vs reference"

    print("KERNEL_OK")
</pallas_src>

<mosaic_0001>
module attributes {stable_mosaic.version = 11 : i64} {
  func.func @dkn_kernel(%arg0: i32, %arg1: memref<8x8xf32, #tpu.memory_space<vmem>>, %arg2: memref<8x72xf32, #tpu.memory_space<vmem>>, %arg3: memref<1x72xf32, #tpu.memory_space<vmem>>, %arg4: memref<32x32xf32, #tpu.memory_space<vmem>>, %arg5: memref<1x32xf32, #tpu.memory_space<vmem>>, %arg6: memref<72x18xf32, #tpu.memory_space<vmem>>, %arg7: memref<1x18xf32, #tpu.memory_space<vmem>>, %arg8: memref<8x18xf32, #tpu.memory_space<vmem>>) attributes {dimension_semantics = [#tpu.dimension_semantics<parallel>], iteration_bounds = array<i64: 2>, scalar_prefetch = 0 : i64, scratch_operands = 0 : i64, tpu.core_type = #tpu.core_type<tc>, window_params = [{transform_indices = @transform_0, window_bounds = array<i64: 8, 8>}, {pipeline_mode = #tpu.pipeline_mode<synchronous>, transform_indices = @transform_1, window_bounds = array<i64: 8, 72>}, {pipeline_mode = #tpu.pipeline_mode<synchronous>, transform_indices = @transform_2, window_bounds = array<i64: 1, 72>}, {pipeline_mode = #tpu.pipeline_mode<synchronous>, transform_indices = @transform_3, window_bounds = array<i64: 32, 32>}, {pipeline_mode = #tpu.pipeline_mode<synchronous>, transform_indices = @transform_4, window_bounds = array<i64: 1, 32>}, {pipeline_mode = #tpu.pipeline_mode<synchronous>, transform_indices = @transform_5, window_bounds = array<i64: 72, 18>}, {pipeline_mode = #tpu.pipeline_mode<synchronous>, transform_indices = @transform_6, window_bounds = array<i64: 1, 18>}, {transform_indices = @transform_7, window_bounds = array<i64: 8, 18>}]} {
    %c0 = arith.constant 0 : index
    %c0_0 = arith.constant 0 : index
    %0 = vector.load %arg1[%c0, %c0_0] : memref<8x8xf32, #tpu.memory_space<vmem>>, vector<8x8xf32>
    %1 = arith.cmpf one, %0, %0 : vector<8x8xf32>
    %cst = arith.constant 0.000000e+00 : f32
    %2 = vector.broadcast %cst : f32 to vector<8x8xf32>
    %3 = arith.select %1, %2, %0 : vector<8x8xi1>, vector<8x8xf32>
    %cst_1 = arith.constant 0x7F800000 : f32
    %4 = vector.broadcast %cst_1 : f32 to vector<8x8xf32>
    %5 = arith.cmpf oeq, %3, %4 : vector<8x8xf32>
    %cst_2 = arith.constant 1.000000e+00 : f32
    %6 = vector.broadcast %cst_2 : f32 to vector<8x8xf32>
    %7 = arith.select %5, %6, %3 : vector<8x8xi1>, vector<8x8xf32>
    %cst_3 = arith.constant 0xFF800000 : f32
    %8 = vector.broadcast %cst_3 : f32 to vector<8x8xf32>
    %9 = arith.cmpf oeq, %7, %8 : vector<8x8xf32>
    %cst_4 = arith.constant -1.000000e+00 : f32
    %10 = vector.broadcast %cst_4 : f32 to vector<8x8xf32>
    %11 = arith.select %9, %10, %7 : vector<8x8xi1>, vector<8x8xf32>
    %c0_5 = arith.constant 0 : index
    %c0_6 = arith.constant 0 : index
    %12 = vector.load %arg2[%c0_5, %c0_6] : memref<8x72xf32, #tpu.memory_space<vmem>>, vector<8x72xf32>
    %cst_7 = arith.constant dense<0.000000e+00> : vector<8x72xf32>
    %13 = tpu.matmul %11, %12, %cst_7 {dimension_numbers = #tpu.dot_dimension_numbers<[1], [0], [0], [1], [0, 0, 1, 1], [], []>} : vector<8x8xf32>, vector<8x72xf32>, vector<8x72xf32> -> vector<8x72xf32>
    %c0_8 = arith.constant 0 : index
    %c0_9 = arith.constant 0 : index
    %14 = vector.load %arg3[%c0_8, %c0_9] : memref<1x72xf32, #tpu.memory_space<vmem>>, vector<1x72xf32>
    %15 = vector.broadcast %14 : vector<1x72xf32> to vector<8x72xf32>
    %16 = arith.addf %13, %15 : vector<8x72xf32>
    %cst_10 = arith.constant 0.000000e+00 : f32
    %17 = vector.broadcast %cst_10 : f32 to vector<8x72xf32>
    %18 = arith.maximumf %16, %17 : vector<8x72xf32>
    %19 = vector.extract_strided_slice %18 {offsets = [0, 0], sizes = [8, 32], strides = [1, 1]} : vector<8x72xf32> to vector<8x32xf32>
    %20 = vector.extract_strided_slice %18 {offsets = [0, 32], sizes = [8, 40], strides = [1, 1]} : vector<8x72xf32> to vector<8x40xf32>
    %c0_11 = arith.constant 0 : index
    %c0_12 = arith.constant 0 : index
    %21 = vector.load %arg4[%c0_11, %c0_12] : memref<32x32xf32, #tpu.memory_space<vmem>>, vector<32x32xf32>
    %cst_13 = arith.constant dense<0.000000e+00> : vector<8x32xf32>
    %22 = tpu.matmul %19, %21, %cst_13 {dimension_numbers = #tpu.dot_dimension_numbers<[1], [0], [0], [1], [0, 0, 1, 1], [], []>} : vector<8x32xf32>, vector<32x32xf32>, vector<8x32xf32> -> vector<8x32xf32>
    %c0_14 = arith.constant 0 : index
    %c0_15 = arith.constant 0 : index
    %23 = vector.load %arg5[%c0_14, %c0_15] : memref<1x32xf32, #tpu.memory_space<vmem>>, vector<1x32xf32>
    %24 = vector.broadcast %23 : vector<1x32xf32> to vector<8x32xf32>
    %25 = arith.addf %22, %24 : vector<8x32xf32>
    %cst_16 = arith.constant 0.000000e+00 : f32
    %26 = vector.broadcast %cst_16 : f32 to vector<8x32xf32>
    %27 = arith.maximumf %25, %26 : vector<8x32xf32>
    %28 = tpu.concatenate %27, %20 in 1 : vector<8x32xf32>, vector<8x40xf32> -> vector<8x72xf32>
    %c0_17 = arith.constant 0 : index
    %c0_18 = arith.constant 0 : index
    %29 = vector.load %arg6[%c0_17, %c0_18] : memref<72x18xf32, #tpu.memory_space<vmem>>, vector<72x18xf32>
    %cst_19 = arith.constant dense<0.000000e+00> : vector<8x18xf32>
    %30 = tpu.matmul %28, %29, %cst_19 {dimension_numbers = #tpu.dot_dimension_numbers<[1], [0], [0], [1], [0, 0, 1, 1], [], []>} : vector<8x72xf32>, vector<72x18xf32>, vector<8x18xf32> -> vector<8x18xf32>
    %c0_20 = arith.constant 0 : index
    %c0_21 = arith.constant 0 : index
    %31 = vector.load %arg7[%c0_20, %c0_21] : memref<1x18xf32, #tpu.memory_space<vmem>>, vector<1x18xf32>
    %32 = vector.broadcast %31 : vector<1x18xf32> to vector<8x18xf32>
    %33 = arith.addf %30, %32 : vector<8x18xf32>
    %34 = tpu.iota {dimensions = array<i32: 1>} : vector<8x18xi32>
    %c9_i32 = arith.constant 9 : i32
    %35 = vector.broadcast %c9_i32 : i32 to vector<8x18xi32>
    %36 = arith.cmpi sge, %34, %35 : vector<8x18xi32>
    %cst_22 = arith.constant 2.000000e+01 : f32
    %37 = vector.broadcast %cst_22 : f32 to vector<8x18xf32>
    %38 = arith.cmpf ogt, %33, %37 : vector<8x18xf32>
    %cst_23 = arith.constant 2.000000e+01 : f32
    %39 = vector.broadcast %cst_23 : f32 to vector<8x18xf32>
    %40 = arith.minimumf %33, %39 : vector<8x18xf32>
    %41 = math.exp %40 : vector<8x18xf32>
    %42 = math.log1p %41 : vector<8x18xf32>
    %43 = arith.select %38, %33, %42 : vector<8x18xi1>, vector<8x18xf32>
    %cst_24 = arith.constant 9.99999974E-5 : f32
    %44 = vector.broadcast %cst_24 : f32 to vector<8x18xf32>
    %45 = arith.addf %43, %44 : vector<8x18xf32>
    %46 = arith.select %36, %45, %33 : vector<8x18xi1>, vector<8x18xf32>
    %c0_25 = arith.constant 0 : index
    %c0_26 = arith.constant 0 : index
    %47 = vector.load %arg8[%c0_25, %c0_26] : memref<8x18xf32, #tpu.memory_space<vmem>>, vector<8x18xf32>
    tpu.vector_store %arg8[%c0_25, %c0_26], %46 {strides = array<i32>} : memref<8x18xf32, #tpu.memory_space<vmem>>, vector<8x18xf32>,
    return
  }
  func.func @transform_0(%arg0: i32) -> (i32, i32) {
    %c0_i32 = arith.constant 0 : i32
    %c0_i32_0 = arith.constant 0 : i32
    return %arg0, %c0_i32 : i32, i32
  }
  func.func @transform_1(%arg0: i32) -> (i32, i32) {
    %c0_i32 = arith.constant 0 : i32
    %c0_i32_0 = arith.constant 0 : i32
    %c0_i32_1 = arith.constant 0 : i32
    return %c0_i32, %c0_i32_0 : i32, i32
  }
  func.func @transform_2(%arg0: i32) -> (i32, i32) {
    %c0_i32 = arith.constant 0 : i32
    %c0_i32_0 = arith.constant 0 : i32
    %c0_i32_1 = arith.constant 0 : i32
    return %c0_i32, %c0_i32_0 : i32, i32
  }
  func.func @transform_3(%arg0: i32) -> (i32, i32) {
    %c0_i32 = arith.constant 0 : i32
    %c0_i32_0 = arith.constant 0 : i32
    %c0_i32_1 = arith.constant 0 : i32
    return %c0_i32, %c0_i32_0 : i32, i32
  }
  func.func @transform_4(%arg0: i32) -> (i32, i32) {
    %c0_i32 = arith.constant 0 : i32
    %c0_i32_0 = arith.constant 0 : i32
    %c0_i32_1 = arith.constant 0 : i32
    return %c0_i32, %c0_i32_0 : i32, i32
  }
  func.func @transform_5(%arg0: i32) -> (i32, i32) {
    %c0_i32 = arith.constant 0 : i32
    %c0_i32_0 = arith.constant 0 : i32
    %c0_i32_1 = arith.constant 0 : i32
    return %c0_i32, %c0_i32_0 : i32, i32
  }
  func.func @transform_6(%arg0: i32) -> (i32, i32) {
    %c0_i32 = arith.constant 0 : i32
    %c0_i32_0 = arith.constant 0 : i32
    %c0_i32_1 = arith.constant 0 : i32
    return %c0_i32, %c0_i32_0 : i32, i32
  }
  func.func @transform_7(%arg0: i32) -> (i32, i32) {
    %c0_i32 = arith.constant 0 : i32
    %c0_i32_0 = arith.constant 0 : i32
    return %arg0, %c0_i32 : i32, i32
  }
}

</mosaic_0001>

<llo_original>
// kernel: deep_kalman_forward.1
$region0: #{deep_kalman_forward.1}
  #allocation0 [shape = 'u32[]', space=smem, size = 0x4, offset = 0x4, fixed_abs, tag = 'smem constant byte address 0x4 - core index']
  #allocation1 [shape = 'u32[72,128]{1,0:T(1,128)}', space=vmem, size = 0x9000, scoped, tag = 'internal scratch']
  %s0 = inlined_call_operand.vmem [shape: f32[16,8], index: 0, kind: input, shape index: {}]
  %s1 = inlined_call_operand.vmem [shape: f32[8,72], index: 1, kind: input, shape index: {}]
  %s2 = inlined_call_operand.vmem [shape: f32[1,72], index: 2, kind: input, shape index: {}]
  %s3 = inlined_call_operand.vmem [shape: f32[32,32], index: 3, kind: input, shape index: {}]
  %s4 = inlined_call_operand.vmem [shape: f32[1,32], index: 4, kind: input, shape index: {}]
  %s5 = inlined_call_operand.vmem [shape: f32[72,18], index: 5, kind: input, shape index: {}]
  %s6 = inlined_call_operand.vmem [shape: f32[1,18], index: 6, kind: input, shape index: {}]
  %s7 = inlined_call_operand.vmem [shape: f32[16,18], index: 7, kind: output, shape index: {}]
  %s8 = sld [smem:[#allocation0]]
  $region61: #{deep_kalman_forward.1} parent=0
    _
  %s10 = ssub.s32 1, %s8
  %s11 = scalar_select 0, %s10, %s8
  loop: start=0, step=1, limit=4
  $region2: #{deep_kalman_forward.1} parent=0 // loop_pre_header
    _
  $region3: #{deep_kalman_forward.1} parent=0 // loop_header
    %s13 = sphi 0, %s17
    %p14 = scmp.ge.s32.totalorder %s13, 4
    %s23 = sphi 0, %s25
    %s26 = sphi 0, %s23
    %s27 = sphi 0, %s26
    %s43 = sphi 0, %s27
    %s47 = sphi 0, %s47
    %s49 = sphi 0, %s47
    %s50 = sphi 0, %s49
    %s64 = sphi 0, %s50
    %s68 = sphi 0, %s68
    %s70 = sphi 0, %s68
    %s71 = sphi 0, %s70
    %s85 = sphi 0, %s71
    %s89 = sphi 0, %s89
    %s91 = sphi 0, %s89
    %s92 = sphi 0, %s91
    %s106 = sphi 0, %s92
    %s110 = sphi 0, %s110
    %s112 = sphi 0, %s110
    %s113 = sphi 0, %s112
    %s127 = sphi 0, %s113
    %s131 = sphi 0, %s131
    %s133 = sphi 0, %s131
    %s134 = sphi 0, %s133
    %s148 = sphi 0, %s134
    %s152 = sphi 0, %s152
    %s154 = sphi 0, %s152
    %s155 = sphi 0, %s154
    %s169 = sphi 0, %s155
    %s175 = sphi 0, %s177
    %s178 = sphi 0, %s175
    %s179 = sphi 0, %s178
    %s195 = sphi 0, %s179
  $region4: #{deep_kalman_forward.1} parent=0 // loop_header_branch
    %16 = sbr.rel (%p14) target = $region8
  $region5: #{deep_kalman_forward.1} parent=0 // loop_body
    %s18 = ssub.s32 %s13, 1
    %s19 = ssub.s32 %s13, 2
    %s20 = sadd.s32 %s13, 1
    %s21 = ssub.s32 %s13, %s20
    %p22 = scmp.eq.s32.totalorder %s21, 0
    %s24 = sadd.s32 %s23, 1
    %s25 = scalar_select %p22, %s23, %s24
    %p28 = pneg %p22
    %p29 = scmp.eq.s32.totalorder %s13, 1
    %p30 = por %p28, %p29
    %p31 = scmp.ne.s32.totalorder %s23, %s26
    %p32 = scmp.eq.s32.totalorder %s13, 0
    %p33 = por %p31, %p32
    %p34 = scmp.ne.s32.totalorder %s23, %s26
    %p35 = scmp.eq.s32.totalorder %s18, 1
    %p36 = por %p34, %p35
    %p37 = scmp.ne.s32.totalorder %s26, %s27
    %p38 = scmp.eq.s32.totalorder %s18, 0
    %p39 = por %p37, %p38
    %p40 = scmp.ne.s32.totalorder %s26, %s27
    %p41 = scmp.eq.s32.totalorder %s19, 1
    %p42 = por %p40, %p41
    %p44 = scmp.ne.s32.totalorder %s27, %s43
    %p45 = scmp.eq.s32.totalorder %s19, 0
    %p46 = por %p44, %p45
    %s48 = sadd.s32 %s47, 1
    %p51 = scmp.eq.s32.totalorder %s13, 1
    %p52 = scmp.ne.s32.totalorder %s47, %s49
    %p53 = scmp.eq.s32.totalorder %s13, 0
    %p54 = por %p52, %p53
    %p55 = scmp.ne.s32.totalorder %s47, %s49
    %p56 = scmp.eq.s32.totalorder %s18, 1
    %p57 = por %p55, %p56
    %p58 = scmp.ne.s32.totalorder %s49, %s50
    %p59 = scmp.eq.s32.totalorder %s18, 0
    %p60 = por %p58, %p59
    %p61 = scmp.ne.s32.totalorder %s49, %s50
    %p62 = scmp.eq.s32.totalorder %s19, 1
    %p63 = por %p61, %p62
    %p65 = scmp.ne.s32.totalorder %s50, %s64
    %p66 = scmp.eq.s32.totalorder %s19, 0
    %p67 = por %p65, %p66
    %s69 = sadd.s32 %s68, 1
    %p72 = scmp.eq.s32.totalorder %s13, 1
    %p73 = scmp.ne.s32.totalorder %s68, %s70
    %p74 = scmp.eq.s32.totalorder %s13, 0
    %p75 = por %p73, %p74
    %p76 = scmp.ne.s32.totalorder %s68, %s70
    %p77 = scmp.eq.s32.totalorder %s18, 1
    %p78 = por %p76, %p77
    %p79 = scmp.ne.s32.totalorder %s70, %s71
    %p80 = scmp.eq.s32.totalorder %s18, 0
    %p81 = por %p79, %p80
    %p82 = scmp.ne.s32.totalorder %s70, %s71
    %p83 = scmp.eq.s32.totalorder %s19, 1
    %p84 = por %p82, %p83
    %p86 = scmp.ne.s32.totalorder %s71, %s85
    %p87 = scmp.eq.s32.totalorder %s19, 0
    %p88 = por %p86, %p87
    %s90 = sadd.s32 %s89, 1
    %p93 = scmp.eq.s32.totalorder %s13, 1
    %p94 = scmp.ne.s32.totalorder %s89, %s91
    %p95 = scmp.eq.s32.totalorder %s13, 0
    %p96 = por %p94, %p95
    %p97 = scmp.ne.s32.totalorder %s89, %s91
    %p98 = scmp.eq.s32.totalorder %s18, 1
    %p99 = por %p97, %p98
    %p100 = scmp.ne.s32.totalorder %s91, %s92
    %p101 = scmp.eq.s32.totalorder %s18, 0
    %p102 = por %p100, %p101
    %p103 = scmp.ne.s32.totalorder %s91, %s92
    %p104 = scmp.eq.s32.totalorder %s19, 1
    %p105 = por %p103, %p104
    %p107 = scmp.ne.s32.totalorder %s92, %s106
    %p108 = scmp.eq.s32.totalorder %s19, 0
    %p109 = por %p107, %p108
    %s111 = sadd.s32 %s110, 1
    %p114 = scmp.eq.s32.totalorder %s13, 1
    %p115 = scmp.ne.s32.totalorder %s110, %s112
    %p116 = scmp.eq.s32.totalorder %s13, 0
    %p117 = por %p115, %p116
    %p118 = scmp.ne.s32.totalorder %s110, %s112
    %p119 = scmp.eq.s32.totalorder %s18, 1
    %p120 = por %p118, %p119
    %p121 = scmp.ne.s32.totalorder %s112, %s113
    %p122 = scmp.eq.s32.totalorder %s18, 0
    %p123 = por %p121, %p122
    %p124 = scmp.ne.s32.totalorder %s112, %s113
    %p125 = scmp.eq.s32.totalorder %s19, 1
    %p126 = por %p124, %p125
    %p128 = scmp.ne.s32.totalorder %s113, %s127
    %p129 = scmp.eq.s32.totalorder %s19, 0
    %p130 = por %p128, %p129
    %s132 = sadd.s32 %s131, 1
    %p135 = scmp.eq.s32.totalorder %s13, 1
    %p136 = scmp.ne.s32.totalorder %s131, %s133
    %p137 = scmp.eq.s32.totalorder %s13, 0
    %p138 = por %p136, %p137
    %p139 = scmp.ne.s32.totalorder %s131, %s133
    %p140 = scmp.eq.s32.totalorder %s18, 1
    %p141 = por %p139, %p140
    %p142 = scmp.ne.s32.totalorder %s133, %s134
    %p143 = scmp.eq.s32.totalorder %s18, 0
    %p144 = por %p142, %p143
    %p145 = scmp.ne.s32.totalorder %s133, %s134
    %p146 = scmp.eq.s32.totalorder %s19, 1
    %p147 = por %p145, %p146
    %p149 = scmp.ne.s32.totalorder %s134, %s148
    %p150 = scmp.eq.s32.totalorder %s19, 0
    %p151 = por %p149, %p150
    %s153 = sadd.s32 %s152, 1
    %p156 = scmp.eq.s32.totalorder %s13, 1
    %p157 = scmp.ne.s32.totalorder %s152, %s154
    %p158 = scmp.eq.s32.totalorder %s13, 0
    %p159 = por %p157, %p158
    %p160 = scmp.ne.s32.totalorder %s152, %s154
    %p161 = scmp.eq.s32.totalorder %s18, 1
    %p162 = por %p160, %p161
    %p163 = scmp.ne.s32.totalorder %s154, %s155
    %p164 = scmp.eq.s32.totalorder %s18, 0
    %p165 = por %p163, %p164
    %p166 = scmp.ne.s32.totalorder %s154, %s155
    %p167 = scmp.eq.s32.totalorder %s19, 1
    %p168 = por %p166, %p167
    %p170 = scmp.ne.s32.totalorder %s155, %s169
    %p171 = scmp.eq.s32.totalorder %s19, 0
    %p172 = por %p170, %p171
    %s173 = ssub.s32 %s13, %s20
    %p174 = scmp.eq.s32.totalorder %s173, 0
    %s176 = sadd.s32 %s175, 1
    %s177 = scalar_select %p174, %s175, %s176
    %p180 = pneg %p174
    %p181 = scmp.eq.s32.totalorder %s13, 1
    %p182 = por %p180, %p181
    %p183 = scmp.ne.s32.totalorder %s175, %s178
    %p184 = scmp.eq.s32.totalorder %s13, 0
    %p185 = por %p183, %p184
    %p186 = scmp.ne.s32.totalorder %s175, %s178
    %p187 = scmp.eq.s32.totalorder %s18, 1
    %p188 = por %p186, %p187
    %p189 = scmp.ne.s32.totalorder %s178, %s179
    %p190 = scmp.eq.s32.totalorder %s18, 0
    %p191 = por %p189, %p190
    %p192 = scmp.ne.s32.totalorder %s178, %s179
    %p193 = scmp.eq.s32.totalorder %s19, 1
    %p194 = por %p192, %p193
    %p196 = scmp.ne.s32.totalorder %s179, %s195
    %p197 = scmp.eq.s32.totalorder %s19, 0
    %p198 = por %p196, %p197
    %p199 = scmp.le.s32.totalorder 1, %s13
    %p200 = scmp.lt.s32.totalorder %s13, 3
    %p201 = pnand %p199, %p200
    %p202 = pneg %p201
    // Predicated region
    $region9: #{deep_kalman_forward.1} parent=5 // pred_check
      _
    $region10: #{deep_kalman_forward.1} parent=5 // pred_check_branch
      %204 = sbr.rel (%p201) target = $region12
    $region11: #{deep_kalman_forward.1} parent=5 // pred_region
      %s205 = ssub.s32 %s13, 1
      // Predicated region
      $region13: #{deep_kalman_forward.1} parent=11 // pred_check
        %p206 = pneg %p60
      $region14: #{deep_kalman_forward.1} parent=11 // pred_check_branch
        %208 = sbr.rel (%p206) target = $region16
      $region15: #{deep_kalman_forward.1} parent=11 // pred_region
        _
      $region16: #{deep_kalman_forward.1} parent=11 // pred_fallthru
        _
      // Predicated region
      $region17: #{deep_kalman_forward.1} parent=11 // pred_check
        %p209 = pneg %p81
      $region18: #{deep_kalman_forward.1} parent=11 // pred_check_branch
        %211 = sbr.rel (%p209) target = $region20
      $region19: #{deep_kalman_forward.1} parent=11 // pred_region
        _
      $region20: #{deep_kalman_forward.1} parent=11 // pred_fallthru
        _
      // Predicated region
      $region21: #{deep_kalman_forward.1} parent=11 // pred_check
        %p212 = pneg %p102
      $region22: #{deep_kalman_forward.1} parent=11 // pred_check_branch
        %214 = sbr.rel (%p212) target = $region24
      $region23: #{deep_kalman_forward.1} parent=11 // pred_region
        _
      $region24: #{deep_kalman_forward.1} parent=11 // pred_fallthru
        _
      // Predicated region
      $region25: #{deep_kalman_forward.1} parent=11 // pred_check
        %p215 = pneg %p123
      $region26: #{deep_kalman_forward.1} parent=11 // pred_check_branch
        %217 = sbr.rel (%p215) target = $region28
      $region27: #{deep_kalman_forward.1} parent=11 // pred_region
        _
      $region28: #{deep_kalman_forward.1} parent=11 // pred_fallthru
        _
      // Predicated region
      $region29: #{deep_kalman_forward.1} parent=11 // pred_check
        %p218 = pneg %p144
      $region30: #{deep_kalman_forward.1} parent=11 // pred_check_branch
        %220 = sbr.rel (%p218) target = $region32
      $region31: #{deep_kalman_forward.1} parent=11 // pred_region
        _
      $region32: #{deep_kalman_forward.1} parent=11 // pred_fallthru
        _
      // Predicated region
      $region33: #{deep_kalman_forward.1} parent=11 // pred_check
        %p221 = pneg %p165
      $region34: #{deep_kalman_forward.1} parent=11 // pred_check_branch
        %223 = sbr.rel (%p221) target = $region36
      $region35: #{deep_kalman_forward.1} parent=11 // pred_region
        _
      $region36: #{deep_kalman_forward.1} parent=11 // pred_fallthru
        _
    $region12: #{deep_kalman_forward.1} parent=5 // pred_fallthru
      _
    %p224 = scmp.lt.s32.totalorder %s13, 2
    // Predicated region
    $region37: #{deep_kalman_forward.1} parent=5 // pred_check
      %p225 = pneg %p224
    $region38: #{deep_kalman_forward.1} parent=5 // pred_check_branch
      %227 = sbr.rel (%p225) target = $region40
    $region39: #{deep_kalman_forward.1} parent=5 // pred_region
      // Predicated region
      $region41: #{deep_kalman_forward.1} parent=39 // pred_check
        %p228 = pneg %p33
      $region42: #{deep_kalman_forward.1} parent=39 // pred_check_branch
        %230 = sbr.rel (%p228) target = $region44
      $region43: #{deep_kalman_forward.1} parent=39 // pred_region
        %p231 = scmp.lt.s32.totalorder %s13, 1
        %s232 = scalar_select %p231, %s13, 1
        %s233 = smul.addr %s232, 8
        %s234 = scalar_lea.vmem %s0, %s233
      $region44: #{deep_kalman_forward.1} parent=39 // pred_fallthru
        _
    $region40: #{deep_kalman_forward.1} parent=5 // pred_fallthru
      _
    %p235 = scmp.le.s32.totalorder 1, %s13
    %p236 = scmp.lt.s32.totalorder %s13, 3
    %p237 = pnand %p235, %p236
    %p238 = pneg %p237
    // Predicated region
    $region45: #{deep_kalman_forward.1} parent=5 // pred_check
      _
    $region46: #{deep_kalman_forward.1} parent=5 // pred_check_branch
      %240 = sbr.rel (%p237) target = $region48
    $region47: #{deep_kalman_forward.1} parent=5 // pred_region
      %s241 = ssub.s32 %s13, 1
      %p242 = scmp.lt.s32.totalorder %s18, 1
      %s243 = scalar_select %p242, %s18, 1
      %s244 = smul.addr %s243, 8
      %s245 = scalar_lea.vmem %s0, %s244
      %p246 = pneg %p39
      %p247 = pneg %p36
      %p248 = pneg %p60
      %p249 = pneg %p57
      %p250 = pneg %p81
      %p251 = pneg %p78
      %p252 = pneg %p102
      %p253 = pneg %p99
      %p254 = pneg %p123
      %p255 = pneg %p120
      %p256 = pneg %p144
      %p257 = pneg %p141
      %p258 = pneg %p165
      %p259 = pneg %p162
      %p260 = pneg %p191
      %p261 = pneg %p188
      %p262 = scmp.lt.s32.totalorder %s18, 1
      %s263 = scalar_select %p262, %s18, 1
      %s264 = smul.addr %s263, 8
      %s265 = scalar_lea.vmem %s7, %s264
      %p266 = scmp.lt.s32.totalorder %s18, 1
      %s267 = scalar_select %p266, %s18, 1
      %s268 = smul.addr %s267, 8
      %s269 = scalar_lea.vmem %s0, %s268
      %p270 = scmp.lt.s32.totalorder %s18, 1
      %s271 = scalar_select %p270, %s18, 1
      %s272 = smul.addr %s271, 8
      %s273 = scalar_lea.vmem %s7, %s272
      %v274 = vld [vmem:[%s269] sm:$0xff]
      %vm275 = vcmp.ne.f32.partialorder %v274, %v274
      %v276 = vsel %vm275, 0.0, %v274
      %vm277 = vcmp.eq.f32.partialorder %v276, inf
      %v278 = vsel %vm277, 1.0, %v276
      %vm279 = vcmp.eq.f32.partialorder %v278, -inf
      %v280 = vsel %vm279, -1.0, %v278
      %v281 = vld [vmem:[%s1] sm:$0xff]
      %v282 = vld [vmem:[%s2] sm:$0x1]
      %v284 = vperm.slane %v282, 0
      %vm286 = vcmask 64512
      %v288 = vsel %vm286, %v280, 0
      %290 = vmatpush.msra.mxu0 0.0
      %291 = vmatpush.msra.mxu0 0.0
      %292 = vmatpush.msra.mxu0 0.0
      %293 = vmatpush.msra.mxu0 0.0
      %294 = vmatpush.msra.mxu0 0.0
      %295 = vmatpush.msra.mxu0 0.0
      %296 = vmatpush.msra.mxu0 0.0
      %297 = vmatpush.msra.mxu0 0.0
      %298 = vmatpush.msra.mxu0 0.0
      %299 = vmatpush.msra.mxu0 0.0
      %300 = vmatpush.msra.mxu0 0.0
      %301 = vmatpush.msra.mxu0 0.0
      %302 = vmatpush.msra.mxu0 0.0
      %303 = vmatpush.msra.mxu0 0.0
      %304 = vmatpush.msra.mxu0 0.0
      %305 = vmatpush.msra.mxu0 %v281
      %306 = vmatmul.f32.gmra.mxu0 %v288
      %v307 = vpop.f32.mrf.mxu0
      %v308 = vadd.f32 %v284, %v307
      %309 = vdwg.mxu0
      %v310 = vmax.f32 %v308, 0.0
      %v311 = vld [vmem:[%s3] sm:$0xff]
      %v312 = vld [vmem:[%s3 + $0x8] sm:$0xff]
      %v313 = vld [vmem:[%s3 + $0x10] sm:$0xff]
      %v314 = vld [vmem:[%s3 + $0x18] sm:$0xff]
      %v315 = vld [vmem:[%s4] sm:$0x1]
      %v317 = vperm.slane %v315, 0
      %vm319 = vcmask 261120
      %v321 = vsel %vm319, %v310, 0
      %323 = vmatpush.msra.mxu0 0.0
      %324 = vmatpush.msra.mxu0 0.0
      %325 = vmatpush.msra.mxu0 0.0
      %326 = vmatpush.msra.mxu0 0.0
      %327 = vmatpush.msra.mxu0 0.0
      %328 = vmatpush.msra.mxu0 0.0
      %329 = vmatpush.msra.mxu0 0.0
      %330 = vmatpush.msra.mxu0 0.0
      %331 = vmatpush.msra.mxu0 0.0
      %332 = vmatpush.msra.mxu0 0.0
      %333 = vmatpush.msra.mxu0 0.0
      %334 = vmatpush.msra.mxu0 0.0
      %335 = vmatpush.msra.mxu0 %v314
      %336 = vmatpush.msra.mxu0 %v313
      %337 = vmatpush.msra.mxu0 %v312
      %338 = vmatpush.msra.mxu0 %v311
      %339 = vmatmul.f32.gmra.mxu0 %v321
      %v340 = vpop.f32.mrf.mxu0
      %v341 = vadd.f32 %v317, %v340
      %342 = vdwg.mxu0
      %v343 = vmax.f32 %v341, 0.0
      %v344 = vsel %vm319, %v343, %v310
      %v345 = vld [vmem:[%s5] sm:$0xff]
      %v346 = vld [vmem:[%s5 + $0x8] sm:$0xff]
      %v347 = vld [vmem:[%s5 + $0x10] sm:$0xff]
      %v348 = vld [vmem:[%s5 + $0x18] sm:$0xff]
      %v349 = vld [vmem:[%s5 + $0x20] sm:$0xff]
      %v350 = vld [vmem:[%s5 + $0x28] sm:$0xff]
      %v351 = vld [vmem:[%s5 + $0x30] sm:$0xff]
      %v352 = vld [vmem:[%s5 + $0x38] sm:$0xff]
      %v353 = vld [vmem:[%s5 + $0x40] sm:$0xff]
      %v354 = vld [vmem:[%s6] sm:$0x1]
      %v356 = vperm.slane %v354, 0
      %vm358 = vcmask 588800
      %v360 = vsel %vm358, %v344, 0
      %362 = vmatpush.msra.mxu0 0.0
      %363 = vmatpush.msra.mxu0 0.0
      %364 = vmatpush.msra.mxu0 0.0
      %365 = vmatpush.msra.mxu0 0.0
      %366 = vmatpush.msra.mxu0 0.0
      %367 = vmatpush.msra.mxu0 0.0
      %368 = vmatpush.msra.mxu0 0.0
      %369 = vmatpush.msra.mxu0 %v353
      %370 = vmatpush.msra.mxu0 %v352
      %371 = vmatpush.msra.mxu0 %v351
      %372 = vmatpush.msra.mxu0 %v350
      %373 = vmatpush.msra.mxu0 %v349
      %374 = vmatpush.msra.mxu0 %v348
      %375 = vmatpush.msra.mxu0 %v347
      %376 = vmatpush.msra.mxu0 %v346
      %377 = vmatpush.msra.mxu0 %v345
      %378 = vmatmul.f32.gmra.mxu0 %v360
      %v379 = vpop.f32.mrf.mxu0
      %v380 = vadd.f32 %v356, %v379
      %381 = vdwg.mxu0
      %v382 = vlaneseq
      %v383 = vand.u32 %v382, 127
      %vm384 = vcmp.ge.s32.totalorder %v383, 9
      %vm385 = vcmp.gt.f32.partialorder %v380, 20.0
      %v386 = vmin.f32 %v380, 20.0
      %v387 = vmul.f32 %v386, 1.442695
      %v388 = vpow.pop %v387
      %v389 = vadd.f32 %v388, 1.0
      %v390 = vlog2.pop %v389
      %v391 = vmul.f32 %v390, 0.6931472
      %v392 = vmul.f32 -0.5, %v388
      %v393 = vadd.f32 %v392, 1.0
      %v394 = vmul.f32 %v393, %v388
      %v395 = vand.u32 2147483647, %v388
      %vm396 = vcmp.lt.f32.partialorder %v395, 0.0004427343
      %v397 = vsel %vm396, %v394, %v391
      %v398 = vsel %vm385, %v380, %v397
      %v399 = vadd.f32 %v398, 0.0001
      %v400 = vsel %vm384, %v399, %v380
      %vm401 = vcmask 146432
      %402 = vst.msk [vmem:[%s273] sm:$0xff] %vm401, %v400
      %p403 = scmp.lt.s32.totalorder %s18, 1
      %s404 = scalar_select %p403, %s18, 1
      %s405 = smul.addr %s404, 8
      %s406 = scalar_lea.vmem %s7, %s405
      // Predicated region
      $region49: #{deep_kalman_forward.1} parent=47 // pred_check
        %p407 = pneg %p188
      $region50: #{deep_kalman_forward.1} parent=47 // pred_check_branch
        %409 = sbr.rel (%p407) target = $region52
      $region51: #{deep_kalman_forward.1} parent=47 // pred_region
        _
      $region52: #{deep_kalman_forward.1} parent=47 // pred_fallthru
        _
    $region48: #{deep_kalman_forward.1} parent=5 // pred_fallthru
      _
    %p410 = scmp.le.s32.totalorder 2, %s13
    // Predicated region
    $region53: #{deep_kalman_forward.1} parent=5 // pred_check
      %p411 = pneg %p410
    $region54: #{deep_kalman_forward.1} parent=5 // pred_check_branch
      %413 = sbr.rel (%p411) target = $region56
    $region55: #{deep_kalman_forward.1} parent=5 // pred_region
      %s414 = ssub.s32 %s13, 2
      // Predicated region
      $region57: #{deep_kalman_forward.1} parent=55 // pred_check
        %p415 = pneg %p194
      $region58: #{deep_kalman_forward.1} parent=55 // pred_check_branch
        %417 = sbr.rel (%p415) target = $region60
      $region59: #{deep_kalman_forward.1} parent=55 // pred_region
        %p418 = scmp.lt.s32.totalorder %s19, 1
        %s419 = scalar_select %p418, %s19, 1
        %s420 = smul.addr %s419, 8
        %s421 = scalar_lea.vmem %s7, %s420
      $region60: #{deep_kalman_forward.1} parent=55 // pred_fallthru
        _
    $region56: #{deep_kalman_forward.1} parent=5 // pred_fallthru
      _
  $region6: #{deep_kalman_forward.1} parent=0 // loop_footer
    %s17 = sadd.s32 1, %s13
  $region7: #{deep_kalman_forward.1} parent=0 // loop_footer_branch
    %12 = sbr.rel target = $region3
  $region8: #{deep_kalman_forward.1} parent=0 // loop_exit
    _

</llo_original>
